<compile_context>
chip_gen: v6e
topology: v6e:2x2x1
jax: 0.10.0
libtpu: 0.0.40
codegen_flags: <defaults>
</compile_context>

<pallas_src>
import functools

import jax
import jax.numpy as jnp
from jax.experimental import pallas as pl
from jax.experimental.pallas import tpu as pltpu


A_PAD = 128  # lane-dense width of the fused head matmul (internal only)


def _round_up(x, m):
    return ((x + m - 1) // m) * m


def _dueling_q_kernel(n_actions,
                      x_ref, mask_ref,
                      w0_ref, b0_ref,     # MPM stand-in (fused obs+emb input)
                      w1_ref, b1_ref,     # fused [_adv_layer | _state_v_layer]
                      w2_ref, b2_ref,     # fused block-diag [_adv ; _v], lane-padded
                      out_ref):
    # ---- MPM stand-in: shared = relu(x @ W0 + b0), single K=d_in matmul ----
    shared = jnp.dot(x_ref[...], w0_ref[...], preferred_element_type=jnp.float32)
    shared = jnp.maximum(shared + b0_ref[...], 0.0)

    # ---- fused hidden layer of both dueling branches: (TB, 2F) ----
    hid = jnp.dot(shared.astype(jnp.bfloat16), w1_ref[...],
                  preferred_element_type=jnp.float32) + b1_ref[...]
    hid = jnp.maximum(hid, 0.0)

    # ---- fused output layer: z[:, :A] = advantages, z[:, A] = V(s) ----
    z = jnp.dot(hid.astype(jnp.bfloat16), w2_ref[...],
                preferred_element_type=jnp.float32) + b2_ref[...]

    mask = mask_ref[...]                               # (TB, A) f32, native width
    adv = z[:, :n_actions]                             # (TB, A) static lane slice
    val = z[:, n_actions:n_actions + 1]                # (TB, 1) static lane slice

    # masked mean-centering of the advantages
    sum_legal = jnp.sum(adv * mask, axis=1, keepdims=True)
    n_legal = jnp.maximum(jnp.sum(mask, axis=1, keepdims=True), 1e-8)
    mean_legal = sum_legal / n_legal

    # single-pass masking: mask in {0,1}  =>  (val + (adv-mean)*m)*m == m*(adv-mean+val)
    out_ref[...] = mask * (adv - mean_legal + val)


def prepare_params(params):
    """One-time packing/fusing/casting of weights (hoisted out of the hot path)."""
    F = params["wa1"].shape[1]
    A = params["wa2"].shape[1]
    assert A < A_PAD, "value column needs a spare lane (n_actions must be < 128)"

    # fuse the two branch hidden layers into one (H, 2F) weight
    w1 = jnp.concatenate([params["wa1"], params["wv1"]], axis=1).astype(jnp.bfloat16)
    b1 = jnp.concatenate([params["ba1"], params["bv1"]], axis=1).astype(jnp.float32)

    # block-diagonal + lane-padded output layer: (2F, 128); column A carries V(s)
    w2 = jnp.zeros((2 * F, A_PAD), jnp.float32)
    w2 = w2.at[:F, :A].set(params["wa2"])
    w2 = w2.at[F:, A:A + 1].set(params["wv2"])
    w2 = w2.astype(jnp.bfloat16)
    b2 = jnp.zeros((1, A_PAD), jnp.float32)
    b2 = b2.at[:, :A].set(params["ba2"])
    b2 = b2.at[:, A:A + 1].set(params["bv2"])

    packed = {
        "range_emb": params["range_emb"].astype(jnp.bfloat16),
        "w0": params["w0"].astype(jnp.bfloat16),
        "b0": params["b0"].astype(jnp.float32),
        "w1": w1, "b1": b1, "w2": w2, "b2": b2,
        "n_actions": A,
    }
    return jax.tree_util.tree_map(
        lambda x: jax.device_put(x) if isinstance(x, jnp.ndarray) else x, packed)


def dueling_q_forward(pub_obses, range_idxs, legal_action_masks, packed, *,
                      batch_tile=1024):
    """Per-call glue: flatten obs, embed range idxs, run one gridded kernel."""
    B = pub_obses.shape[0]
    A = packed["n_actions"]
    assert legal_action_masks.shape == (B, A)

    obs = pub_obses.reshape(B, -1).astype(jnp.bfloat16)
    emb = packed["range_emb"][range_idxs]                      # gather (XLA glue)
    x = jnp.concatenate([obs, emb], axis=1)                    # (B, d_in) bf16
    d_in = x.shape[1]
    mask = legal_action_masks.astype(jnp.float32)              # native (B, A)

    w0, b0 = packed["w0"], packed["b0"]
    w1, b1 = packed["w1"], packed["b1"]
    w2, b2 = packed["w2"], packed["b2"]
    H = w0.shape[1]
    F2 = w1.shape[1]

    # ---- batch tiling: rows independent; TB multiple of 8; >= 2 grid steps ----
    B8 = _round_up(B, 8)
    TB = min(_round_up(batch_tile, 8), B8)
    if B8 >= 16 and B8 <= TB:            # ensure 2 grid steps for v7x megacore
        TB = _round_up((B8 + 1) // 2, 8)
    B_pad = _round_up(B, TB)
    if B_pad != B:
        x = jnp.pad(x, ((0, B_pad - B), (0, 0)))
        mask = jnp.pad(mask, ((0, B_pad - B), (0, 0)))
    grid = (B_pad // TB,)

    def batch_spec(feat):
        return pl.BlockSpec((TB, feat), lambda i: (i, 0))

    def resident(arr):                   # weights: fetched once, stay in VMEM
        return pl.BlockSpec(arr.shape, lambda i: (0, 0))

    flops = 2 * B_pad * (d_in * H + H * F2 + F2 * A_PAD)
    bytes_accessed = (x.size * 2 + mask.size * 4 + B_pad * A * 4
                      + (w0.size + w1.size + w2.size) * 2
                      + (b0.size + b1.size + b2.size) * 4)

    out = pl.pallas_call(
        functools.partial(_dueling_q_kernel, A),
        out_shape=jax.ShapeDtypeStruct((B_pad, A), jnp.float32),
        grid=grid,
        in_specs=[batch_spec(d_in), batch_spec(A),
                  resident(w0), resident(b0),
                  resident(w1), resident(b1),
                  resident(w2), resident(b2)],
        out_specs=batch_spec(A),
        compiler_params=pltpu.CompilerParams(dimension_semantics=("parallel",)),
        cost_estimate=pl.CostEstimate(flops=int(flops), transcendentals=0,
                                      bytes_accessed=int(bytes_accessed)),
    )(x, mask, w0, b0, w1, b1, w2, b2)

    return out[:B]


def make_params(key, obs_dim, emb_dim, range_size, mpm_units, n_units_final, n_actions):
    ks = jax.random.split(key, 11)
    d_in = obs_dim + emb_dim
    s = 0.1
    return {
        "range_emb": s * jax.random.normal(ks[0], (range_size, emb_dim), jnp.float32),
        "w0":  s * jax.random.normal(ks[1], (d_in, mpm_units), jnp.float32),
        "b0":  s * jax.random.normal(ks[2], (1, mpm_units), jnp.float32),
        "wa1": s * jax.random.normal(ks[3], (mpm_units, n_units_final), jnp.float32),
        "ba1": s * jax.random.normal(ks[4], (1, n_units_final), jnp.float32),
        "wa2": s * jax.random.normal(ks[5], (n_units_final, n_actions), jnp.float32),
        "ba2": s * jax.random.normal(ks[6], (1, n_actions), jnp.float32),
        "wv1": s * jax.random.normal(ks[7], (mpm_units, n_units_final), jnp.float32),
        "bv1": s * jax.random.normal(ks[8], (1, n_units_final), jnp.float32),
        "wv2": s * jax.random.normal(ks[9], (n_units_final, 1), jnp.float32),
        "bv2": s * jax.random.normal(ks[10], (1, 1), jnp.float32),
    }


def reference_forward(pub_obses, range_idxs, legal_action_masks, params):
    """Pure-JAX reference mirroring the PyTorch forward (bf16 matmuls, f32 accum)."""
    B = pub_obses.shape[0]

    def mm(a, w):
        return jnp.dot(a.astype(jnp.bfloat16), w.astype(jnp.bfloat16),
                       preferred_element_type=jnp.float32)

    x = jnp.concatenate([pub_obses.reshape(B, -1),
                         params["range_emb"][range_idxs]], axis=1)
    shared = jax.nn.relu(mm(x, params["w0"]) + params["b0"])
    a = jax.nn.relu(mm(shared, params["wa1"]) + params["ba1"])
    y = mm(a, params["wa2"]) + params["ba2"]
    m = legal_action_masks
    mean = (y * m).sum(1, keepdims=True) / jnp.maximum(m.sum(1, keepdims=True), 1e-8)
    centered = (y - mean) * m
    v = jax.nn.relu(mm(shared, params["wv1"]) + params["bv1"])
    val = mm(v, params["wv2"]) + params["bv2"]
    return (val + centered) * m


if __name__ == "__main__":
    # small shapes consistent with the module's forward
    B, OBS_DIM, EMB_DIM, RANGE_SIZE = 4, 24, 8, 16
    MPM_UNITS, N_UNITS_FINAL, N_ACTIONS = 64, 32, 8

    key = jax.random.PRNGKey(0)
    k_obs, k_idx, k_mask, k_param = jax.random.split(key, 4)

    params = make_params(k_param, OBS_DIM, EMB_DIM, RANGE_SIZE,
                         MPM_UNITS, N_UNITS_FINAL, N_ACTIONS)
    packed = prepare_params(params)        # one-time weight packing (hoisted)

    pub_obses = jax.random.normal(k_obs, (B, OBS_DIM), jnp.float32)
    range_idxs = jax.random.randint(k_idx, (B,), 0, RANGE_SIZE)
    legal_action_masks = (jax.random.uniform(k_mask, (B, N_ACTIONS)) > 0.3).astype(jnp.float32)
    # guarantee at least one legal action per row
    legal_action_masks = legal_action_masks.at[:, 0].set(1.0)

    out = dueling_q_forward(pub_obses, range_idxs, legal_action_masks, packed)
    out = jax.block_until_ready(out)

    ref = reference_forward(pub_obses, range_idxs, legal_action_masks, params)
    assert out.shape == (B, N_ACTIONS)
    assert jnp.allclose(out, ref, atol=1e-3, rtol=1e-3), float(jnp.max(jnp.abs(out - ref)))

    print("KERNEL_OK")
</pallas_src>

<mosaic_0001>
module attributes {stable_mosaic.version = 11 : i64} {
  func.func @_dueling_q_kernel(%arg0: i32, %arg1: memref<8x32xbf16, #tpu.memory_space<vmem>>, %arg2: memref<8x8xf32, #tpu.memory_space<vmem>>, %arg3: memref<32x64xbf16, #tpu.memory_space<vmem>>, %arg4: memref<1x64xf32, #tpu.memory_space<vmem>>, %arg5: memref<64x64xbf16, #tpu.memory_space<vmem>>, %arg6: memref<1x64xf32, #tpu.memory_space<vmem>>, %arg7: memref<64x128xbf16, #tpu.memory_space<vmem>>, %arg8: memref<1x128xf32, #tpu.memory_space<vmem>>, %arg9: memref<8x8xf32, #tpu.memory_space<vmem>>) attributes {dimension_semantics = [#tpu.dimension_semantics<parallel>], iteration_bounds = array<i64: 1>, scalar_prefetch = 0 : i64, scratch_operands = 0 : i64, tpu.core_type = #tpu.core_type<tc>, window_params = [{transform_indices = @transform_0, window_bounds = array<i64: 8, 32>}, {transform_indices = @transform_1, window_bounds = array<i64: 8, 8>}, {pipeline_mode = #tpu.pipeline_mode<synchronous>, transform_indices = @transform_2, window_bounds = array<i64: 32, 64>}, {pipeline_mode = #tpu.pipeline_mode<synchronous>, transform_indices = @transform_3, window_bounds = array<i64: 1, 64>}, {pipeline_mode = #tpu.pipeline_mode<synchronous>, transform_indices = @transform_4, window_bounds = array<i64: 64, 64>}, {pipeline_mode = #tpu.pipeline_mode<synchronous>, transform_indices = @transform_5, window_bounds = array<i64: 1, 64>}, {pipeline_mode = #tpu.pipeline_mode<synchronous>, transform_indices = @transform_6, window_bounds = array<i64: 64, 128>}, {pipeline_mode = #tpu.pipeline_mode<synchronous>, transform_indices = @transform_7, window_bounds = array<i64: 1, 128>}, {transform_indices = @transform_8, window_bounds = array<i64: 8, 8>}]} {
    %c0 = arith.constant 0 : index
    %c0_0 = arith.constant 0 : index
    %0 = vector.load %arg1[%c0, %c0_0] : memref<8x32xbf16, #tpu.memory_space<vmem>>, vector<8x32xbf16>
    %c0_1 = arith.constant 0 : index
    %c0_2 = arith.constant 0 : index
    %1 = vector.load %arg3[%c0_1, %c0_2] : memref<32x64xbf16, #tpu.memory_space<vmem>>, vector<32x64xbf16>
    %cst = arith.constant dense<0.000000e+00> : vector<8x64xf32>
    %2 = tpu.matmul %0, %1, %cst {dimension_numbers = #tpu.dot_dimension_numbers<[1], [0], [0], [1], [0, 0, 1, 1], [], []>} : vector<8x32xbf16>, vector<32x64xbf16>, vector<8x64xf32> -> vector<8x64xf32>
    %c0_3 = arith.constant 0 : index
    %c0_4 = arith.constant 0 : index
    %3 = vector.load %arg4[%c0_3, %c0_4] : memref<1x64xf32, #tpu.memory_space<vmem>>, vector<1x64xf32>
    %4 = vector.broadcast %3 : vector<1x64xf32> to vector<8x64xf32>
    %5 = arith.addf %2, %4 : vector<8x64xf32>
    %cst_5 = arith.constant 0.000000e+00 : f32
    %6 = vector.broadcast %cst_5 : f32 to vector<8x64xf32>
    %7 = arith.maximumf %5, %6 : vector<8x64xf32>
    %8 = arith.truncf %7 : vector<8x64xf32> to vector<8x64xbf16>
    %c0_6 = arith.constant 0 : index
    %c0_7 = arith.constant 0 : index
    %9 = vector.load %arg5[%c0_6, %c0_7] : memref<64x64xbf16, #tpu.memory_space<vmem>>, vector<64x64xbf16>
    %cst_8 = arith.constant dense<0.000000e+00> : vector<8x64xf32>
    %10 = tpu.matmul %8, %9, %cst_8 {dimension_numbers = #tpu.dot_dimension_numbers<[1], [0], [0], [1], [0, 0, 1, 1], [], []>} : vector<8x64xbf16>, vector<64x64xbf16>, vector<8x64xf32> -> vector<8x64xf32>
    %c0_9 = arith.constant 0 : index
    %c0_10 = arith.constant 0 : index
    %11 = vector.load %arg6[%c0_9, %c0_10] : memref<1x64xf32, #tpu.memory_space<vmem>>, vector<1x64xf32>
    %12 = vector.broadcast %11 : vector<1x64xf32> to vector<8x64xf32>
    %13 = arith.addf %10, %12 : vector<8x64xf32>
    %cst_11 = arith.constant 0.000000e+00 : f32
    %14 = vector.broadcast %cst_11 : f32 to vector<8x64xf32>
    %15 = arith.maximumf %13, %14 : vector<8x64xf32>
    %16 = arith.truncf %15 : vector<8x64xf32> to vector<8x64xbf16>
    %c0_12 = arith.constant 0 : index
    %c0_13 = arith.constant 0 : index
    %17 = vector.load %arg7[%c0_12, %c0_13] : memref<64x128xbf16, #tpu.memory_space<vmem>>, vector<64x128xbf16>
    %cst_14 = arith.constant dense<0.000000e+00> : vector<8x128xf32>
    %18 = tpu.matmul %16, %17, %cst_14 {dimension_numbers = #tpu.dot_dimension_numbers<[1], [0], [0], [1], [0, 0, 1, 1], [], []>} : vector<8x64xbf16>, vector<64x128xbf16>, vector<8x128xf32> -> vector<8x128xf32>
    %c0_15 = arith.constant 0 : index
    %c0_16 = arith.constant 0 : index
    %19 = vector.load %arg8[%c0_15, %c0_16] : memref<1x128xf32, #tpu.memory_space<vmem>>, vector<1x128xf32>
    %20 = vector.broadcast %19 : vector<1x128xf32> to vector<8x128xf32>
    %21 = arith.addf %18, %20 : vector<8x128xf32>
    %c0_17 = arith.constant 0 : index
    %c0_18 = arith.constant 0 : index
    %22 = vector.load %arg2[%c0_17, %c0_18] : memref<8x8xf32, #tpu.memory_space<vmem>>, vector<8x8xf32>
    %23 = vector.extract_strided_slice %21 {offsets = [0, 0], sizes = [8, 8], strides = [1, 1]} : vector<8x128xf32> to vector<8x8xf32>
    %24 = vector.extract_strided_slice %21 {offsets = [0, 8], sizes = [8, 1], strides = [1, 1]} : vector<8x128xf32> to vector<8x1xf32>
    %25 = arith.mulf %23, %22 : vector<8x8xf32>
    %cst_19 = arith.constant dense<0.000000e+00> : vector<8xf32>
    %26 = vector.multi_reduction <add>, %25, %cst_19 [1] : vector<8x8xf32> to vector<8xf32>
    %27 = vector.shape_cast %26 : vector<8xf32> to vector<8x1xf32>
    %cst_20 = arith.constant dense<0.000000e+00> : vector<8xf32>
    %28 = vector.multi_reduction <add>, %22, %cst_20 [1] : vector<8x8xf32> to vector<8xf32>
    %29 = vector.shape_cast %28 : vector<8xf32> to vector<8x1xf32>
    %cst_21 = arith.constant 9.99999993E-9 : f32
    %30 = vector.broadcast %cst_21 : f32 to vector<8x1xf32>
    %31 = arith.maximumf %29, %30 : vector<8x1xf32>
    %32 = arith.divf %27, %31 : vector<8x1xf32>
    %33 = vector.broadcast %32 : vector<8x1xf32> to vector<8x8xf32>
    %34 = arith.subf %23, %33 : vector<8x8xf32>
    %35 = vector.broadcast %24 : vector<8x1xf32> to vector<8x8xf32>
    %36 = arith.addf %34, %35 : vector<8x8xf32>
    %37 = arith.mulf %22, %36 : vector<8x8xf32>
    %c0_22 = arith.constant 0 : index
    %c0_23 = arith.constant 0 : index
    %38 = vector.load %arg9[%c0_22, %c0_23] : memref<8x8xf32, #tpu.memory_space<vmem>>, vector<8x8xf32>
    tpu.vector_store %arg9[%c0_22, %c0_23], %37 {strides = array<i32>} : memref<8x8xf32, #tpu.memory_space<vmem>>, vector<8x8xf32>,
    return
  }
  func.func @transform_0(%arg0: i32) -> (i32, i32) {
    %c0_i32 = arith.constant 0 : i32
    %c0_i32_0 = arith.constant 0 : i32
    return %arg0, %c0_i32 : i32, i32
  }
  func.func @transform_1(%arg0: i32) -> (i32, i32) {
    %c0_i32 = arith.constant 0 : i32
    %c0_i32_0 = arith.constant 0 : i32
    return %arg0, %c0_i32 : i32, i32
  }
  func.func @transform_2(%arg0: i32) -> (i32, i32) {
    %c0_i32 = arith.constant 0 : i32
    %c0_i32_0 = arith.constant 0 : i32
    %c0_i32_1 = arith.constant 0 : i32
    return %c0_i32, %c0_i32_0 : i32, i32
  }
  func.func @transform_3(%arg0: i32) -> (i32, i32) {
    %c0_i32 = arith.constant 0 : i32
    %c0_i32_0 = arith.constant 0 : i32
    %c0_i32_1 = arith.constant 0 : i32
    return %c0_i32, %c0_i32_0 : i32, i32
  }
  func.func @transform_4(%arg0: i32) -> (i32, i32) {
    %c0_i32 = arith.constant 0 : i32
    %c0_i32_0 = arith.constant 0 : i32
    %c0_i32_1 = arith.constant 0 : i32
    return %c0_i32, %c0_i32_0 : i32, i32
  }
  func.func @transform_5(%arg0: i32) -> (i32, i32) {
    %c0_i32 = arith.constant 0 : i32
    %c0_i32_0 = arith.constant 0 : i32
    %c0_i32_1 = arith.constant 0 : i32
    return %c0_i32, %c0_i32_0 : i32, i32
  }
  func.func @transform_6(%arg0: i32) -> (i32, i32) {
    %c0_i32 = arith.constant 0 : i32
    %c0_i32_0 = arith.constant 0 : i32
    %c0_i32_1 = arith.constant 0 : i32
    return %c0_i32, %c0_i32_0 : i32, i32
  }
  func.func @transform_7(%arg0: i32) -> (i32, i32) {
    %c0_i32 = arith.constant 0 : i32
    %c0_i32_0 = arith.constant 0 : i32
    %c0_i32_1 = arith.constant 0 : i32
    return %c0_i32, %c0_i32_0 : i32, i32
  }
  func.func @transform_8(%arg0: i32) -> (i32, i32) {
    %c0_i32 = arith.constant 0 : i32
    %c0_i32_0 = arith.constant 0 : i32
    return %arg0, %c0_i32 : i32, i32
  }
}

</mosaic_0001>

<llo_original>
// kernel: tpu_custom_call.1
$region0: #{tpu_custom_call.1}
  #allocation0 [shape = 'u32[]', space=smem, size = 0x4, offset = 0x4, fixed_abs, tag = 'smem constant byte address 0x4 - core index']
  #allocation1 [shape = 'u32[144,128]{1,0:T(1,128)}', space=vmem, size = 0x12000, scoped, tag = 'internal scratch']
  %s0 = inlined_call_operand.hbm [shape: bf16[8,32], index: 0, kind: input, shape index: {}]
  %s1 = inlined_call_operand.hbm [shape: f32[8,8], index: 1, kind: input, shape index: {}]
  %s2 = inlined_call_operand.hbm [shape: bf16[32,64], index: 2, kind: input, shape index: {}]
  %s3 = inlined_call_operand.vmem [shape: f32[1,64], index: 3, kind: input, shape index: {}]
  %s4 = inlined_call_operand.hbm [shape: bf16[64,64], index: 4, kind: input, shape index: {}]
  %s5 = inlined_call_operand.vmem [shape: f32[1,64], index: 5, kind: input, shape index: {}]
  %s6 = inlined_call_operand.hbm [shape: bf16[64,128], index: 6, kind: input, shape index: {}]
  %s7 = inlined_call_operand.vmem [shape: f32[1,128], index: 7, kind: input, shape index: {}]
  %s8 = inlined_call_operand.hbm [shape: f32[8,8], index: 8, kind: output, shape index: {}]
  %s9 = sld [smem:[#allocation0]]
  $region62: #{tpu_custom_call.1} parent=0
    _
  %s11 = ssub.s32 1, %s9
  %s12 = scalar_select 0, %s11, %s9
  $region1: #{tpu_custom_call.1} parent=0
    #allocation2 [shape = 'u8[2048]{0}', space=vmem, size = 0x800, scoped, tag = 'input window, operand 0, single buffered']
    #allocation3 [shape = 's32[1]{0}', space=sflag, size = 0x4, scoped, tag = 'scoped memory for tpu_custom_call.1']
    #allocation4 [shape = 's32[1]{0}', space=sflag, size = 0x4, scoped, tag = 'scoped memory for tpu_custom_call.1']
    #allocation5 [shape = 'u8[4096]{0}', space=vmem, size = 0x1000, scoped, tag = 'input window, operand 1, single buffered']
    #allocation6 [shape = 's32[1]{0}', space=sflag, size = 0x4, scoped, tag = 'scoped memory for tpu_custom_call.1']
    #allocation7 [shape = 'u8[8192]{0}', space=vmem, size = 0x2000, scoped, tag = 'input window, operand 2, single buffered']
    #allocation8 [shape = 'u8[16384]{0}', space=vmem, size = 0x4000, scoped, tag = 'input window, operand 4, single buffered']
    #allocation9 [shape = 's32[1]{0}', space=sflag, size = 0x4, scoped, tag = 'scoped memory for tpu_custom_call.1']
    #allocation10 [shape = 'u8[16384]{0}', space=vmem, size = 0x4000, scoped, tag = 'input window, operand 6, single buffered']
    #allocation11 [shape = 'u8[4096]{0}', space=vmem, size = 0x1000, scoped, tag = 'output window, operand 0, single buffered']
    %13 = vsyncpa [#allocation3], 0
    %14 = vsyncpa [#allocation6], 0
    %15 = vsyncpa [#allocation9], 0
    %16 = vsyncpa [#allocation4], 0
    // Predicated region
    $region2: #{tpu_custom_call.1} parent=1 // pred_check
      _
    $region3: #{tpu_custom_call.1} parent=1 // pred_check_branch
      %18 = sbr.rel (0) target = $region5
    $region4: #{tpu_custom_call.1} parent=1 // pred_region
      %s20 = ssub.s32 64, 64
      %21 = vsyncadd [#allocation3], %s20
      %s23 = sshll.u32 [#allocation2], 4
      %s24 = int_to_ptr.vmem [resolvable:$true] %s23
      %26 = dma.hbm_to_vmem [thread:$0]  %s0, 64, %s24, [#allocation3]
    $region5: #{tpu_custom_call.1} parent=1 // pred_fallthru
      _
    // Predicated region
    $region6: #{tpu_custom_call.1} parent=1 // pred_check
      _
    $region7: #{tpu_custom_call.1} parent=1 // pred_check_branch
      %28 = sbr.rel (0) target = $region9
    $region8: #{tpu_custom_call.1} parent=1 // pred_region
      %s30 = ssub.s32 128, 128
      %31 = vsyncadd [#allocation6], %s30
      %s33 = sshll.u32 [#allocation5], 4
      %s34 = int_to_ptr.vmem [resolvable:$true] %s33
      %36 = dma.hbm_to_vmem [thread:$0]  %s1, 128, %s34, [#allocation6]
    $region9: #{tpu_custom_call.1} parent=1 // pred_fallthru
      _
    // Predicated region
    $region10: #{tpu_custom_call.1} parent=1 // pred_check
      _
    $region11: #{tpu_custom_call.1} parent=1 // pred_check_branch
      %38 = sbr.rel (0) target = $region13
    $region12: #{tpu_custom_call.1} parent=1 // pred_region
      %s40 = ssub.s32 256, 256
      %41 = vsyncadd [#allocation6], %s40
      %s42 = sshll.u32 [#allocation7], 4
      %s43 = int_to_ptr.vmem [resolvable:$true] %s42
      %48 = dma.hbm_to_vmem [thread:$0]  %s2, 256, %s43, [#allocation6], 64, 64, 4
    $region13: #{tpu_custom_call.1} parent=1 // pred_fallthru
      _
    // Predicated region
    $region14: #{tpu_custom_call.1} parent=1 // pred_check
      _
    $region15: #{tpu_custom_call.1} parent=1 // pred_check_branch
      %50 = sbr.rel (0) target = $region17
    $region16: #{tpu_custom_call.1} parent=1 // pred_region
      _
    $region17: #{tpu_custom_call.1} parent=1 // pred_fallthru
      _
    // Predicated region
    $region18: #{tpu_custom_call.1} parent=1 // pred_check
      _
    $region19: #{tpu_custom_call.1} parent=1 // pred_check_branch
      %52 = sbr.rel (0) target = $region21
    $region20: #{tpu_custom_call.1} parent=1 // pred_region
      %s54 = ssub.s32 512, 512
      %55 = vsyncadd [#allocation9], %s54
      %s56 = sshll.u32 [#allocation8], 4
      %s57 = int_to_ptr.vmem [resolvable:$true] %s56
      %62 = dma.hbm_to_vmem [thread:$0]  %s4, 512, %s57, [#allocation9], 64, 64, 4
    $region21: #{tpu_custom_call.1} parent=1 // pred_fallthru
      _
    // Predicated region
    $region22: #{tpu_custom_call.1} parent=1 // pred_check
      _
    $region23: #{tpu_custom_call.1} parent=1 // pred_check_branch
      %64 = sbr.rel (0) target = $region25
    $region24: #{tpu_custom_call.1} parent=1 // pred_region
      _
    $region25: #{tpu_custom_call.1} parent=1 // pred_fallthru
      _
    // Predicated region
    $region26: #{tpu_custom_call.1} parent=1 // pred_check
      _
    $region27: #{tpu_custom_call.1} parent=1 // pred_check_branch
      %66 = sbr.rel (0) target = $region29
    $region28: #{tpu_custom_call.1} parent=1 // pred_region
      %s68 = ssub.s32 512, 512
      %69 = vsyncadd [#allocation9], %s68
      %s70 = sshll.u32 [#allocation10], 4
      %s71 = int_to_ptr.vmem [resolvable:$true] %s70
      %76 = dma.hbm_to_vmem [thread:$0]  %s6, 512, %s71, [#allocation9], 64, 64, 4
    $region29: #{tpu_custom_call.1} parent=1 // pred_fallthru
      _
    // Predicated region
    $region30: #{tpu_custom_call.1} parent=1 // pred_check
      _
    $region31: #{tpu_custom_call.1} parent=1 // pred_check_branch
      %78 = sbr.rel (0) target = $region33
    $region32: #{tpu_custom_call.1} parent=1 // pred_region
      _
    $region33: #{tpu_custom_call.1} parent=1 // pred_fallthru
      _
    // Predicated region
    $region34: #{tpu_custom_call.1} parent=1 // pred_check
      _
    $region35: #{tpu_custom_call.1} parent=1 // pred_check_branch
      %80 = sbr.rel (0) target = $region37
    $region36: #{tpu_custom_call.1} parent=1 // pred_region
      %81 = dma.done [#allocation3], 64
    $region37: #{tpu_custom_call.1} parent=1 // pred_fallthru
      _
    // Predicated region
    $region38: #{tpu_custom_call.1} parent=1 // pred_check
      _
    $region39: #{tpu_custom_call.1} parent=1 // pred_check_branch
      %83 = sbr.rel (0) target = $region41
    $region40: #{tpu_custom_call.1} parent=1 // pred_region
      %84 = dma.done [#allocation6], 128
    $region41: #{tpu_custom_call.1} parent=1 // pred_fallthru
      _
    // Predicated region
    $region42: #{tpu_custom_call.1} parent=1 // pred_check
      _
    $region43: #{tpu_custom_call.1} parent=1 // pred_check_branch
      %86 = sbr.rel (0) target = $region45
    $region44: #{tpu_custom_call.1} parent=1 // pred_region
      %87 = dma.done [#allocation6], 256
    $region45: #{tpu_custom_call.1} parent=1 // pred_fallthru
      _
    // Predicated region
    $region46: #{tpu_custom_call.1} parent=1 // pred_check
      _
    $region47: #{tpu_custom_call.1} parent=1 // pred_check_branch
      %89 = sbr.rel (0) target = $region49
    $region48: #{tpu_custom_call.1} parent=1 // pred_region
      %90 = dma.done [#allocation9], 512
    $region49: #{tpu_custom_call.1} parent=1 // pred_fallthru
      _
    // Predicated region
    $region50: #{tpu_custom_call.1} parent=1 // pred_check
      _
    $region51: #{tpu_custom_call.1} parent=1 // pred_check_branch
      %92 = sbr.rel (0) target = $region53
    $region52: #{tpu_custom_call.1} parent=1 // pred_region
      %93 = dma.done [#allocation9], 512
    $region53: #{tpu_custom_call.1} parent=1 // pred_fallthru
      _
    %v95 = vld [vmem:[#allocation2] sm:$0xf]
    %v96 = vld [vmem:[#allocation7] sm:$0xf]
    %v97 = vld [vmem:[#allocation7 + $0x4] sm:$0xf]
    %v98 = vld [vmem:[#allocation7 + $0x8] sm:$0xf]
    %v99 = vld [vmem:[#allocation7 + $0xc] sm:$0xf]
    %v100 = vld [vmem:[%s3] sm:$0x1]
    %v102 = vlaneseq
    %v103 = vshrl.u32 %v102, 7
    %v104 = vsub.s32 0, %v103
    %v105 = vrot.slane %v100, %v104
    %v111 = vunpack.c.l.b16 %v96
    %v112 = vunpack.c.l.b16 %v97
    %v113 = vunpack.c.l.b16 %v98
    %v114 = vunpack.c.l.b16 %v99
    %v115 = vpack.c.b16 %v112, %v111
    %v116 = vpack.c.b16 %v114, %v113
    %vm119 = vcmask 261120
    %v121 = vsel %vm119, %v95, 0
    %123 = vmatprep.subr.bf16.mxu0 0
    %124 = vmatpush1.bf16.msra.mxu0 0
    %125 = vmatprep.subr.bf16.mxu0 0
    %126 = vmatpush1.bf16.msra.mxu0 0
    %127 = vmatprep.subr.bf16.mxu0 0
    %128 = vmatpush1.bf16.msra.mxu0 0
    %129 = vmatprep.subr.bf16.mxu0 0
    %130 = vmatpush1.bf16.msra.mxu0 0
    %131 = vmatprep.subr.bf16.mxu0 0
    %132 = vmatpush1.bf16.msra.mxu0 0
    %133 = vmatprep.subr.bf16.mxu0 0
    %134 = vmatpush1.bf16.msra.mxu0 0
    %135 = vmatprep.subr.bf16.mxu0 0
    %136 = vmatpush1.bf16.msra.mxu0 %v116
    %137 = vmatprep.subr.bf16.mxu0 0
    %138 = vmatpush1.bf16.msra.mxu0 %v115
    %139 = vmatprep.subr.bf16.mxu0 0
    %140 = vmatpush2.bf16.msra.mxu0 0
    %141 = vmatprep.subr.bf16.mxu0 0
    %142 = vmatpush2.bf16.msra.mxu0 0
    %143 = vmatprep.subr.bf16.mxu0 0
    %144 = vmatpush2.bf16.msra.mxu0 0
    %145 = vmatprep.subr.bf16.mxu0 0
    %146 = vmatpush2.bf16.msra.mxu0 0
    %147 = vmatprep.subr.bf16.mxu0 0
    %148 = vmatpush2.bf16.msra.mxu0 0
    %149 = vmatprep.subr.bf16.mxu0 0
    %150 = vmatpush2.bf16.msra.mxu0 0
    %151 = vmatprep.subr.bf16.mxu0 0
    %152 = vmatpush2.bf16.msra.mxu0 0
    %153 = vmatprep.subr.bf16.mxu0 0
    %154 = vmatpush2.bf16.msra.mxu0 0
    %155 = vmatprep.mubr.bf16.mxu0 0
    %156 = vmatmul.mubr.bf16.gmra.mxu0 %v121
    %v157 = vpop.f32.mrf.mxu0
    %v158 = vadd.f32 %v105, %v157
    %v159 = vpop.f32.mrf.mxu0
    %v160 = vpop.f32.mrf.mxu0
    %v161 = vpop.f32.mrf.mxu0
    %162 = vdwg.mxu0
    %v163 = vmax.f32 %v158, 0.0
    %v164 = vpack.c.bf16 %v163, %v163
    %v165 = vld [vmem:[#allocation8] sm:$0xf]
    %v166 = vld [vmem:[#allocation8 + $0x4] sm:$0xf]
    %v167 = vld [vmem:[#allocation8 + $0x8] sm:$0xf]
    %v168 = vld [vmem:[#allocation8 + $0xc] sm:$0xf]
    %v169 = vld [vmem:[#allocation8 + $0x10] sm:$0xf]
    %v170 = vld [vmem:[#allocation8 + $0x14] sm:$0xf]
    %v171 = vld [vmem:[#allocation8 + $0x18] sm:$0xf]
    %v172 = vld [vmem:[#allocation8 + $0x1c] sm:$0xf]
    %v173 = vld [vmem:[%s5] sm:$0x1]
    %v175 = vlaneseq
    %v176 = vshrl.u32 %v175, 7
    %v177 = vsub.s32 0, %v176
    %v178 = vrot.slane %v173, %v177
    %v188 = vunpack.c.l.b16 %v165
    %v189 = vunpack.c.l.b16 %v166
    %v190 = vunpack.c.l.b16 %v167
    %v191 = vunpack.c.l.b16 %v168
    %v192 = vunpack.c.l.b16 %v169
    %v193 = vunpack.c.l.b16 %v170
    %v194 = vunpack.c.l.b16 %v171
    %v195 = vunpack.c.l.b16 %v172
    %v196 = vpack.c.b16 %v189, %v188
    %v197 = vpack.c.b16 %v191, %v190
    %v198 = vpack.c.b16 %v193, %v192
    %v199 = vpack.c.b16 %v195, %v194
    %vm204 = vcmask 523264
    %v206 = vsel %vm204, %v164, 0
    %208 = vmatprep.subr.bf16.mxu0 0
    %209 = vmatpush1.bf16.msra.mxu0 0
    %210 = vmatprep.subr.bf16.mxu0 0
    %211 = vmatpush1.bf16.msra.mxu0 0
    %212 = vmatprep.subr.bf16.mxu0 0
    %213 = vmatpush1.bf16.msra.mxu0 0
    %214 = vmatprep.subr.bf16.mxu0 0
    %215 = vmatpush1.bf16.msra.mxu0 0
    %216 = vmatprep.subr.bf16.mxu0 0
    %217 = vmatpush1.bf16.msra.mxu0 %v199
    %218 = vmatprep.subr.bf16.mxu0 0
    %219 = vmatpush1.bf16.msra.mxu0 %v198
    %220 = vmatprep.subr.bf16.mxu0 0
    %221 = vmatpush1.bf16.msra.mxu0 %v197
    %222 = vmatprep.subr.bf16.mxu0 0
    %223 = vmatpush1.bf16.msra.mxu0 %v196
    %224 = vmatprep.subr.bf16.mxu0 0
    %225 = vmatpush2.bf16.msra.mxu0 0
    %226 = vmatprep.subr.bf16.mxu0 0
    %227 = vmatpush2.bf16.msra.mxu0 0
    %228 = vmatprep.subr.bf16.mxu0 0
    %229 = vmatpush2.bf16.msra.mxu0 0
    %230 = vmatprep.subr.bf16.mxu0 0
    %231 = vmatpush2.bf16.msra.mxu0 0
    %232 = vmatprep.subr.bf16.mxu0 0
    %233 = vmatpush2.bf16.msra.mxu0 0
    %234 = vmatprep.subr.bf16.mxu0 0
    %235 = vmatpush2.bf16.msra.mxu0 0
    %236 = vmatprep.subr.bf16.mxu0 0
    %237 = vmatpush2.bf16.msra.mxu0 0
    %238 = vmatprep.subr.bf16.mxu0 0
    %239 = vmatpush2.bf16.msra.mxu0 0
    %240 = vmatprep.mubr.bf16.mxu0 0
    %241 = vmatmul.mubr.bf16.gmra.mxu0 %v206
    %v242 = vpop.f32.mrf.mxu0
    %v243 = vadd.f32 %v178, %v242
    %v244 = vpop.f32.mrf.mxu0
    %v245 = vpop.f32.mrf.mxu0
    %v246 = vpop.f32.mrf.mxu0
    %247 = vdwg.mxu0
    %v248 = vmax.f32 %v243, 0.0
    %v249 = vpack.c.bf16 %v248, %v248
    %v250 = vld [vmem:[#allocation10] sm:$0xf]
    %v251 = vld [vmem:[#allocation10 + $0x4] sm:$0xf]
    %v252 = vld [vmem:[#allocation10 + $0x8] sm:$0xf]
    %v253 = vld [vmem:[#allocation10 + $0xc] sm:$0xf]
    %v254 = vld [vmem:[#allocation10 + $0x10] sm:$0xf]
    %v255 = vld [vmem:[#allocation10 + $0x14] sm:$0xf]
    %v256 = vld [vmem:[#allocation10 + $0x18] sm:$0xf]
    %v257 = vld [vmem:[#allocation10 + $0x1c] sm:$0xf]
    %v258 = vld [vmem:[%s7] sm:$0x1]
    %v260 = vlaneseq
    %v261 = vshrl.u32 %v260, 7
    %v262 = vsub.s32 0, %v261
    %v263 = vrot.slane %v258, %v262
    %v273 = vunpack.c.l.b16 %v250
    %v274 = vunpack.c.l.b16 %v251
    %v275 = vunpack.c.l.b16 %v252
    %v276 = vunpack.c.l.b16 %v253
    %v277 = vunpack.c.l.b16 %v254
    %v278 = vunpack.c.l.b16 %v255
    %v279 = vunpack.c.l.b16 %v256
    %v280 = vunpack.c.l.b16 %v257
    %v281 = vpack.c.b16 %v274, %v273
    %v282 = vpack.c.b16 %v276, %v275
    %v283 = vpack.c.b16 %v278, %v277
    %v284 = vpack.c.b16 %v280, %v279
    %v290 = vsel %vm204, %v249, 0
    %292 = vmatprep.subr.bf16.mxu0 0
    %293 = vmatpush1.bf16.msra.mxu0 0
    %294 = vmatprep.subr.bf16.mxu0 0
    %295 = vmatpush1.bf16.msra.mxu0 0
    %296 = vmatprep.subr.bf16.mxu0 0
    %297 = vmatpush1.bf16.msra.mxu0 0
    %298 = vmatprep.subr.bf16.mxu0 0
    %299 = vmatpush1.bf16.msra.mxu0 0
    %300 = vmatprep.subr.bf16.mxu0 0
    %301 = vmatpush1.bf16.msra.mxu0 %v284
    %302 = vmatprep.subr.bf16.mxu0 0
    %303 = vmatpush1.bf16.msra.mxu0 %v283
    %304 = vmatprep.subr.bf16.mxu0 0
    %305 = vmatpush1.bf16.msra.mxu0 %v282
    %306 = vmatprep.subr.bf16.mxu0 0
    %307 = vmatpush1.bf16.msra.mxu0 %v281
    %308 = vmatprep.subr.bf16.mxu0 0
    %309 = vmatpush2.bf16.msra.mxu0 0
    %310 = vmatprep.subr.bf16.mxu0 0
    %311 = vmatpush2.bf16.msra.mxu0 0
    %312 = vmatprep.subr.bf16.mxu0 0
    %313 = vmatpush2.bf16.msra.mxu0 0
    %314 = vmatprep.subr.bf16.mxu0 0
    %315 = vmatpush2.bf16.msra.mxu0 0
    %316 = vmatprep.subr.bf16.mxu0 0
    %317 = vmatpush2.bf16.msra.mxu0 0
    %318 = vmatprep.subr.bf16.mxu0 0
    %319 = vmatpush2.bf16.msra.mxu0 0
    %320 = vmatprep.subr.bf16.mxu0 0
    %321 = vmatpush2.bf16.msra.mxu0 0
    %322 = vmatprep.subr.bf16.mxu0 0
    %323 = vmatpush2.bf16.msra.mxu0 0
    %324 = vmatprep.mubr.bf16.mxu0 0
    %325 = vmatmul.mubr.bf16.gmra.mxu0 %v290
    %v326 = vpop.f32.mrf.mxu0
    %v327 = vadd.f32 %v263, %v326
    %v328 = vpop.f32.mrf.mxu0
    %v329 = vpop.f32.mrf.mxu0
    %v330 = vpop.f32.mrf.mxu0
    %331 = vdwg.mxu0
    %v332 = vld [vmem:[#allocation5] sm:$0xff]
    %v333 = vmul.f32 %v327, %v332
    %vm334 = vcmask 64512
    %v335 = vsel %vm334, %v333, 0.0
    %336 = vadd.xlane.f32.xlu0 %v335
    %v337 = vpop.xlane.xlu0 %336
    %v338 = vsel %vm334, %v332, 0.0
    %339 = vadd.xlane.f32.xlu0 %v338
    %v340 = vpop.xlane.xlu0 %339
    %v341 = vmax.f32 %v340, 1e-08
    %v342 = vrcp.pop %v341
    %v343 = vmul.f32 %v337, %v342
    %v344 = vsub.f32 %v327, %v343
    %346 = vset.pattern.permute.xlu0 8
    %347 = vperm.xlu0 %346, %v327
    %v348 = vpop.permute.xlu0 %347
    %v350 = vadd.f32 %v344, %v348
    %v351 = vmul.f32 %v332, %v350
    %352 = vst.msk [vmem:[#allocation11] sm:$0xff] %vm334, %v351
    // Predicated region
    $region54: #{tpu_custom_call.1} parent=1 // pred_check
      _
    $region55: #{tpu_custom_call.1} parent=1 // pred_check_branch
      %354 = sbr.rel (0) target = $region57
    $region56: #{tpu_custom_call.1} parent=1 // pred_region
      %s356 = ssub.s32 128, 128
      %357 = vsyncadd [#allocation4], %s356
      %s359 = sshll.u32 [#allocation11], 4
      %s360 = int_to_ptr.vmem [resolvable:$true] %s359
      %362 = dma.vmem_to_hbm [thread:$0]  %s360, 128, %s8, [#allocation4]
    $region57: #{tpu_custom_call.1} parent=1 // pred_fallthru
      _
    // Predicated region
    $region58: #{tpu_custom_call.1} parent=1 // pred_check
      _
    $region59: #{tpu_custom_call.1} parent=1 // pred_check_branch
      %364 = sbr.rel (0) target = $region61
    $region60: #{tpu_custom_call.1} parent=1 // pred_region
      %365 = dma.done [#allocation4], 128
    $region61: #{tpu_custom_call.1} parent=1 // pred_fallthru
      _
    %366 = vsyncpa [#allocation3], 1
    %367 = vsyncpa [#allocation6], 1
    %368 = vsyncpa [#allocation9], 1
    %369 = vsyncpa [#allocation4], 1

</llo_original>
